<compile_context>
chip_gen: v5e
topology: v5e:2x2
jax: 0.10.0
libtpu: 0.0.40
codegen_flags: <defaults>
</compile_context>

<pallas_src>
import functools

import jax
import jax.numpy as jnp
from jax.experimental import pallas as pl
from jax.experimental.pallas import tpu as pltpu


def _mlp_kernel(x_ref, w1_ref, b1_ref, w2_ref, b2_ref, w3_ref, b3_ref, o_ref):
    """Fused 3-layer MLP (Linear->ReLU->Linear->ReLU->Linear) on one batch tile.

    Matmuls run on the MXU with f32 accumulation; bias-add + ReLU happen on the
    f32 accumulator (VPU has huge slack here), then activations are cast back
    to the compute dtype (bf16 or f32) for the next MXU pass.
    """
    cd = x_ref.dtype
    x = x_ref[...]                                                      # (TB, IN)
    h1 = jnp.dot(x, w1_ref[...], preferred_element_type=jnp.float32) + b1_ref[...]
    h1 = jnp.maximum(h1, 0.0).astype(cd)                                # ReLU in f32, then downcast
    h2 = jnp.dot(h1, w2_ref[...], preferred_element_type=jnp.float32) + b2_ref[...]
    h2 = jnp.maximum(h2, 0.0).astype(cd)
    out = jnp.dot(h2, w3_ref[...], preferred_element_type=jnp.float32) + b3_ref[...]
    o_ref[...] = out.astype(o_ref.dtype)


def _round_up(n, m):
    return ((n + m - 1) // m) * m


def mlp_forward(x, params, *, batch_tile=None, max_batch_tile=1024,
                compute_dtype=jnp.bfloat16):
    """Pallas TPU forward pass of the aggregator Net MLP.

    x: (B, 20) float32
    params: dict with w1 (20,H), b1 (1,H), w2 (H,H), b2 (1,H), w3 (H,3), b3 (1,3)
    returns: (B, 3) float32
    """
    B, in_dim = x.shape
    H = params["w1"].shape[1]
    out_dim = params["w3"].shape[1]

    # --- batch tiling -------------------------------------------------------
    # Large tiles amortize the ~0.35us/step grid overhead; cap keeps the tile
    # well under the v7x 64 MiB VMEM (with double buffering) for all gens.
    B8 = _round_up(B, 8)
    if batch_tile is None:
        batch_tile = min(B8, max_batch_tile)
    assert batch_tile % 8 == 0, "batch_tile must be a multiple of 8 (sublane)"

    B_pad = _round_up(B, batch_tile)
    x_in = x.astype(compute_dtype)
    if B_pad != B:
        # Only materializes a copy when B is not tile-aligned; padded rows
        # produce bias-only garbage that is sliced off below.
        x_in = jnp.pad(x_in, ((0, B_pad - B), (0, 0)))

    # Weights in compute dtype (MXU-native bf16 on v6e/v7x); biases stay f32
    # since they are added to the f32 accumulator.
    w1 = params["w1"].astype(compute_dtype)
    w2 = params["w2"].astype(compute_dtype)
    w3 = params["w3"].astype(compute_dtype)
    b1 = params["b1"].astype(jnp.float32)
    b2 = params["b2"].astype(jnp.float32)
    b3 = params["b3"].astype(jnp.float32)

    grid = (B_pad // batch_tile,)
    # NOTE(v7x): for very large B the grid is >= 2, so the "parallel" batch
    # axis shards across the 2 TensorCores; for modest B a grid of 1 is optimal
    # on v5e/v6e (single TC).

    out = pl.pallas_call(
        _mlp_kernel,
        out_shape=jax.ShapeDtypeStruct((B_pad, out_dim), jnp.float32),
        grid_spec=pltpu.PrefetchScalarGridSpec(
            num_scalar_prefetch=0,
            grid=grid,
            in_specs=[
                pl.BlockSpec((batch_tile, in_dim), lambda i: (i, 0)),   # x tile (streamed)
                pl.BlockSpec((in_dim, H), lambda i: (0, 0)),            # w1 (resident)
                pl.BlockSpec((1, H), lambda i: (0, 0)),                 # b1 (resident)
                pl.BlockSpec((H, H), lambda i: (0, 0)),                 # w2 (resident)
                pl.BlockSpec((1, H), lambda i: (0, 0)),                 # b2 (resident)
                pl.BlockSpec((H, out_dim), lambda i: (0, 0)),           # w3 (resident)
                pl.BlockSpec((1, out_dim), lambda i: (0, 0)),           # b3 (resident)
            ],
            out_specs=pl.BlockSpec((batch_tile, out_dim), lambda i: (i, 0)),
        ),
        compiler_params=pltpu.CompilerParams(
            dimension_semantics=("parallel",),
            vmem_limit_bytes=32 * 1024 * 1024,   # safe on v5e/v6e/v7x
        ),
    )(x_in, w1, b1, w2, b2, w3, b3)

    return out[:B]


def init_params(key, input_size=20, hidden_size=100, output_size=3):
    """Deterministic parameter init (Kaiming-uniform-ish, like torch Linear)."""
    ks = jax.random.split(key, 6)

    def lin(kw, kb, fan_in, fan_out):
        bound = 1.0 / jnp.sqrt(fan_in)
        w = jax.random.uniform(kw, (fan_in, fan_out), jnp.float32, -bound, bound)
        b = jax.random.uniform(kb, (1, fan_out), jnp.float32, -bound, bound)
        return w, b

    w1, b1 = lin(ks[0], ks[1], input_size, hidden_size)
    w2, b2 = lin(ks[2], ks[3], hidden_size, hidden_size)
    w3, b3 = lin(ks[4], ks[5], hidden_size, output_size)
    return dict(w1=w1, b1=b1, w2=w2, b2=b2, w3=w3, b3=b3)


def mlp_reference(x, p, compute_dtype=jnp.float32):
    """Pure-JAX reference using the same dtype recipe as the kernel."""
    cd = compute_dtype

    def dense(a, w, b):
        return (jnp.dot(a.astype(cd), w.astype(cd),
                        preferred_element_type=jnp.float32)
                + b.astype(jnp.float32))

    h1 = jnp.maximum(dense(x, p["w1"], p["b1"]), 0.0)
    h2 = jnp.maximum(dense(h1, p["w2"], p["b2"]), 0.0)
    return dense(h2, p["w3"], p["b3"])


if __name__ == "__main__":
    key = jax.random.PRNGKey(0)
    k_x, k_p = jax.random.split(key)

    B, IN, H, OUT = 64, 20, 100, 3          # hidden_size=100 as in the PyTorch Net
    x = jax.random.normal(k_x, (B, IN), jnp.float32)
    params = init_params(k_p, input_size=IN, hidden_size=H, output_size=OUT)

    # f32 path: tight check against the f32 reference.
    out_f32 = jax.block_until_ready(
        mlp_forward(x, params, compute_dtype=jnp.float32))
    ref_f32 = mlp_reference(x, params, compute_dtype=jnp.float32)
    assert out_f32.shape == (B, OUT), out_f32.shape
    assert jnp.allclose(out_f32, ref_f32, atol=1e-4, rtol=1e-4), "f32 mismatch"

    # bf16 path (production default): compare against a bf16-cast reference.
    out_bf16 = jax.block_until_ready(
        mlp_forward(x, params, compute_dtype=jnp.bfloat16))
    ref_bf16 = mlp_reference(x, params, compute_dtype=jnp.bfloat16)
    assert out_bf16.shape == (B, OUT), out_bf16.shape
    assert jnp.allclose(out_bf16, ref_bf16, atol=3e-2, rtol=3e-2), "bf16 mismatch"

    # Ragged batch (exercises the tile-alignment / padding branch).
    x_ragged = x[:50]
    out_r = jax.block_until_ready(
        mlp_forward(x_ragged, params, compute_dtype=jnp.float32))
    assert out_r.shape == (50, OUT), out_r.shape
    assert jnp.allclose(out_r, ref_f32[:50], atol=1e-4, rtol=1e-4), "ragged mismatch"

    print("KERNEL_OK")
</pallas_src>

<mosaic_0001>
module attributes {stable_mosaic.version = 11 : i64} {
  func.func @_mlp_kernel(%arg0: i32, %arg1: memref<64x20xf32, #tpu.memory_space<vmem>>, %arg2: memref<20x100xf32, #tpu.memory_space<vmem>>, %arg3: memref<1x100xf32, #tpu.memory_space<vmem>>, %arg4: memref<100x100xf32, #tpu.memory_space<vmem>>, %arg5: memref<1x100xf32, #tpu.memory_space<vmem>>, %arg6: memref<100x3xf32, #tpu.memory_space<vmem>>, %arg7: memref<1x3xf32, #tpu.memory_space<vmem>>, %arg8: memref<64x3xf32, #tpu.memory_space<vmem>>) attributes {dimension_semantics = [#tpu.dimension_semantics<parallel>], iteration_bounds = array<i64: 1>, scalar_prefetch = 0 : i64, scratch_operands = 0 : i64, tpu.core_type = #tpu.core_type<tc>, window_params = [{transform_indices = @transform_0, window_bounds = array<i64: 64, 20>}, {pipeline_mode = #tpu.pipeline_mode<synchronous>, transform_indices = @transform_1, window_bounds = array<i64: 20, 100>}, {pipeline_mode = #tpu.pipeline_mode<synchronous>, transform_indices = @transform_2, window_bounds = array<i64: 1, 100>}, {pipeline_mode = #tpu.pipeline_mode<synchronous>, transform_indices = @transform_3, window_bounds = array<i64: 100, 100>}, {pipeline_mode = #tpu.pipeline_mode<synchronous>, transform_indices = @transform_4, window_bounds = array<i64: 1, 100>}, {pipeline_mode = #tpu.pipeline_mode<synchronous>, transform_indices = @transform_5, window_bounds = array<i64: 100, 3>}, {pipeline_mode = #tpu.pipeline_mode<synchronous>, transform_indices = @transform_6, window_bounds = array<i64: 1, 3>}, {transform_indices = @transform_7, window_bounds = array<i64: 64, 3>}]} {
    %c0 = arith.constant 0 : index
    %c0_0 = arith.constant 0 : index
    %0 = vector.load %arg1[%c0, %c0_0] : memref<64x20xf32, #tpu.memory_space<vmem>>, vector<64x20xf32>
    %c0_1 = arith.constant 0 : index
    %c0_2 = arith.constant 0 : index
    %1 = vector.load %arg2[%c0_1, %c0_2] : memref<20x100xf32, #tpu.memory_space<vmem>>, vector<20x100xf32>
    %cst = arith.constant dense<0.000000e+00> : vector<64x100xf32>
    %2 = tpu.matmul %0, %1, %cst {dimension_numbers = #tpu.dot_dimension_numbers<[1], [0], [0], [1], [0, 0, 1, 1], [], []>} : vector<64x20xf32>, vector<20x100xf32>, vector<64x100xf32> -> vector<64x100xf32>
    %c0_3 = arith.constant 0 : index
    %c0_4 = arith.constant 0 : index
    %3 = vector.load %arg3[%c0_3, %c0_4] : memref<1x100xf32, #tpu.memory_space<vmem>>, vector<1x100xf32>
    %4 = vector.broadcast %3 : vector<1x100xf32> to vector<64x100xf32>
    %5 = arith.addf %2, %4 : vector<64x100xf32>
    %cst_5 = arith.constant 0.000000e+00 : f32
    %6 = vector.broadcast %cst_5 : f32 to vector<64x100xf32>
    %7 = arith.maximumf %5, %6 : vector<64x100xf32>
    %c0_6 = arith.constant 0 : index
    %c0_7 = arith.constant 0 : index
    %8 = vector.load %arg4[%c0_6, %c0_7] : memref<100x100xf32, #tpu.memory_space<vmem>>, vector<100x100xf32>
    %cst_8 = arith.constant dense<0.000000e+00> : vector<64x100xf32>
    %9 = tpu.matmul %7, %8, %cst_8 {dimension_numbers = #tpu.dot_dimension_numbers<[1], [0], [0], [1], [0, 0, 1, 1], [], []>} : vector<64x100xf32>, vector<100x100xf32>, vector<64x100xf32> -> vector<64x100xf32>
    %c0_9 = arith.constant 0 : index
    %c0_10 = arith.constant 0 : index
    %10 = vector.load %arg5[%c0_9, %c0_10] : memref<1x100xf32, #tpu.memory_space<vmem>>, vector<1x100xf32>
    %11 = vector.broadcast %10 : vector<1x100xf32> to vector<64x100xf32>
    %12 = arith.addf %9, %11 : vector<64x100xf32>
    %cst_11 = arith.constant 0.000000e+00 : f32
    %13 = vector.broadcast %cst_11 : f32 to vector<64x100xf32>
    %14 = arith.maximumf %12, %13 : vector<64x100xf32>
    %c0_12 = arith.constant 0 : index
    %c0_13 = arith.constant 0 : index
    %15 = vector.load %arg6[%c0_12, %c0_13] : memref<100x3xf32, #tpu.memory_space<vmem>>, vector<100x3xf32>
    %cst_14 = arith.constant dense<0.000000e+00> : vector<64x3xf32>
    %16 = tpu.matmul %14, %15, %cst_14 {dimension_numbers = #tpu.dot_dimension_numbers<[1], [0], [0], [1], [0, 0, 1, 1], [], []>} : vector<64x100xf32>, vector<100x3xf32>, vector<64x3xf32> -> vector<64x3xf32>
    %c0_15 = arith.constant 0 : index
    %c0_16 = arith.constant 0 : index
    %17 = vector.load %arg7[%c0_15, %c0_16] : memref<1x3xf32, #tpu.memory_space<vmem>>, vector<1x3xf32>
    %18 = vector.broadcast %17 : vector<1x3xf32> to vector<64x3xf32>
    %19 = arith.addf %16, %18 : vector<64x3xf32>
    %c0_17 = arith.constant 0 : index
    %c0_18 = arith.constant 0 : index
    %20 = vector.load %arg8[%c0_17, %c0_18] : memref<64x3xf32, #tpu.memory_space<vmem>>, vector<64x3xf32>
    tpu.vector_store %arg8[%c0_17, %c0_18], %19 {strides = array<i32>} : memref<64x3xf32, #tpu.memory_space<vmem>>, vector<64x3xf32>,
    return
  }
  func.func @transform_0(%arg0: i32) -> (i32, i32) {
    %c0_i32 = arith.constant 0 : i32
    %c0_i32_0 = arith.constant 0 : i32
    return %arg0, %c0_i32 : i32, i32
  }
  func.func @transform_1(%arg0: i32) -> (i32, i32) {
    %c0_i32 = arith.constant 0 : i32
    %c0_i32_0 = arith.constant 0 : i32
    %c0_i32_1 = arith.constant 0 : i32
    return %c0_i32, %c0_i32_0 : i32, i32
  }
  func.func @transform_2(%arg0: i32) -> (i32, i32) {
    %c0_i32 = arith.constant 0 : i32
    %c0_i32_0 = arith.constant 0 : i32
    %c0_i32_1 = arith.constant 0 : i32
    return %c0_i32, %c0_i32_0 : i32, i32
  }
  func.func @transform_3(%arg0: i32) -> (i32, i32) {
    %c0_i32 = arith.constant 0 : i32
    %c0_i32_0 = arith.constant 0 : i32
    %c0_i32_1 = arith.constant 0 : i32
    return %c0_i32, %c0_i32_0 : i32, i32
  }
  func.func @transform_4(%arg0: i32) -> (i32, i32) {
    %c0_i32 = arith.constant 0 : i32
    %c0_i32_0 = arith.constant 0 : i32
    %c0_i32_1 = arith.constant 0 : i32
    return %c0_i32, %c0_i32_0 : i32, i32
  }
  func.func @transform_5(%arg0: i32) -> (i32, i32) {
    %c0_i32 = arith.constant 0 : i32
    %c0_i32_0 = arith.constant 0 : i32
    %c0_i32_1 = arith.constant 0 : i32
    return %c0_i32, %c0_i32_0 : i32, i32
  }
  func.func @transform_6(%arg0: i32) -> (i32, i32) {
    %c0_i32 = arith.constant 0 : i32
    %c0_i32_0 = arith.constant 0 : i32
    %c0_i32_1 = arith.constant 0 : i32
    return %c0_i32, %c0_i32_0 : i32, i32
  }
  func.func @transform_7(%arg0: i32) -> (i32, i32) {
    %c0_i32 = arith.constant 0 : i32
    %c0_i32_0 = arith.constant 0 : i32
    return %arg0, %c0_i32 : i32, i32
  }
}

</mosaic_0001>

<llo_original>
// kernel: tpu_custom_call.1
$region0: #{tpu_custom_call.1}
  #allocation0 [shape = 'u32[]', space=smem, size = 0x4, offset = 0x4, fixed_abs, tag = 'smem constant byte address 0x4 - core index']
  #allocation1 [shape = 'u32[72,128]{1,0:T(1,128)}', space=vmem, size = 0x9000, scoped, tag = 'internal scratch']
  %s0 = inlined_call_operand.vmem [shape: f32[64,20], index: 0, kind: input, shape index: {}]
  %s1 = inlined_call_operand.vmem [shape: f32[20,100], index: 1, kind: input, shape index: {}]
  %s2 = inlined_call_operand.vmem [shape: f32[1,100], index: 2, kind: input, shape index: {}]
  %s3 = inlined_call_operand.vmem [shape: f32[100,100], index: 3, kind: input, shape index: {}]
  %s4 = inlined_call_operand.vmem [shape: f32[1,100], index: 4, kind: input, shape index: {}]
  %s5 = inlined_call_operand.vmem [shape: f32[100,3], index: 5, kind: input, shape index: {}]
  %s6 = inlined_call_operand.vmem [shape: f32[1,3], index: 6, kind: input, shape index: {}]
  %s7 = inlined_call_operand.vmem [shape: f32[64,3], index: 7, kind: output, shape index: {}]
  %s8 = sld [smem:[#allocation0]]
  $region38: #{tpu_custom_call.1} parent=0
    _
  %s10 = ssub.s32 1, %s8
  %s11 = scalar_select 0, %s10, %s8
  // Predicated region
  $region2: #{tpu_custom_call.1} parent=0 // pred_check
    _
  $region3: #{tpu_custom_call.1} parent=0 // pred_check_branch
    %13 = sbr.rel (0) target = $region5
  $region4: #{tpu_custom_call.1} parent=0 // pred_region
    _
  $region5: #{tpu_custom_call.1} parent=0 // pred_fallthru
    _
  // Predicated region
  $region6: #{tpu_custom_call.1} parent=0 // pred_check
    _
  $region7: #{tpu_custom_call.1} parent=0 // pred_check_branch
    %15 = sbr.rel (0) target = $region9
  $region8: #{tpu_custom_call.1} parent=0 // pred_region
    _
  $region9: #{tpu_custom_call.1} parent=0 // pred_fallthru
    _
  // Predicated region
  $region10: #{tpu_custom_call.1} parent=0 // pred_check
    _
  $region11: #{tpu_custom_call.1} parent=0 // pred_check_branch
    %17 = sbr.rel (0) target = $region13
  $region12: #{tpu_custom_call.1} parent=0 // pred_region
    _
  $region13: #{tpu_custom_call.1} parent=0 // pred_fallthru
    _
  // Predicated region
  $region14: #{tpu_custom_call.1} parent=0 // pred_check
    _
  $region15: #{tpu_custom_call.1} parent=0 // pred_check_branch
    %19 = sbr.rel (0) target = $region17
  $region16: #{tpu_custom_call.1} parent=0 // pred_region
    _
  $region17: #{tpu_custom_call.1} parent=0 // pred_fallthru
    _
  // Predicated region
  $region18: #{tpu_custom_call.1} parent=0 // pred_check
    _
  $region19: #{tpu_custom_call.1} parent=0 // pred_check_branch
    %21 = sbr.rel (0) target = $region21
  $region20: #{tpu_custom_call.1} parent=0 // pred_region
    _
  $region21: #{tpu_custom_call.1} parent=0 // pred_fallthru
    _
  // Predicated region
  $region22: #{tpu_custom_call.1} parent=0 // pred_check
    _
  $region23: #{tpu_custom_call.1} parent=0 // pred_check_branch
    %23 = sbr.rel (0) target = $region25
  $region24: #{tpu_custom_call.1} parent=0 // pred_region
    _
  $region25: #{tpu_custom_call.1} parent=0 // pred_fallthru
    _
  // Predicated region
  $region26: #{tpu_custom_call.1} parent=0 // pred_check
    _
  $region27: #{tpu_custom_call.1} parent=0 // pred_check_branch
    %25 = sbr.rel (0) target = $region29
  $region28: #{tpu_custom_call.1} parent=0 // pred_region
    _
  $region29: #{tpu_custom_call.1} parent=0 // pred_fallthru
    _
  %v26 = vld [vmem:[%s0] sm:$0xff]
  %v27 = vld [vmem:[%s0 + $0x8] sm:$0xff]
  %v28 = vld [vmem:[%s0 + $0x10] sm:$0xff]
  %v29 = vld [vmem:[%s0 + $0x18] sm:$0xff]
  %v30 = vld [vmem:[%s0 + $0x20] sm:$0xff]
  %v31 = vld [vmem:[%s0 + $0x28] sm:$0xff]
  %v32 = vld [vmem:[%s0 + $0x30] sm:$0xff]
  %v33 = vld [vmem:[%s0 + $0x38] sm:$0xff]
  %v34 = vld [vmem:[%s1] sm:$0xff]
  %v35 = vld [vmem:[%s1 + $0x8] sm:$0xff]
  %v36 = vld [vmem:[%s1 + $0x10] sm:$0xf]
  %v37 = vld [vmem:[%s2] sm:$0x1]
  %v39 = vperm.slane %v37, 0
  %vm41 = vcmask 162816
  %v43 = vsel %vm41, %v26, 0
  %v46 = vsel %vm41, %v27, 0
  %v49 = vsel %vm41, %v28, 0
  %v52 = vsel %vm41, %v29, 0
  %v55 = vsel %vm41, %v30, 0
  %v58 = vsel %vm41, %v31, 0
  %v61 = vsel %vm41, %v32, 0
  %v64 = vsel %vm41, %v33, 0
  %vm66 = vcmask 1043456
  %v68 = vsel %vm66, %v36, 0
  %70 = vmatpush.msra.mxu0 0.0
  %71 = vmatpush.msra.mxu0 0.0
  %72 = vmatpush.msra.mxu0 0.0
  %73 = vmatpush.msra.mxu0 0.0
  %74 = vmatpush.msra.mxu0 0.0
  %75 = vmatpush.msra.mxu0 0.0
  %76 = vmatpush.msra.mxu0 0.0
  %77 = vmatpush.msra.mxu0 0.0
  %78 = vmatpush.msra.mxu0 0.0
  %79 = vmatpush.msra.mxu0 0.0
  %80 = vmatpush.msra.mxu0 0.0
  %81 = vmatpush.msra.mxu0 0.0
  %82 = vmatpush.msra.mxu0 0.0
  %83 = vmatpush.msra.mxu0 %v68
  %84 = vmatpush.msra.mxu0 %v35
  %85 = vmatpush.msra.mxu0 %v34
  %86 = vmatmul.f32.gmra.mxu0 %v43
  %v87 = vpop.f32.mrf.mxu0
  %v88 = vadd.f32 %v39, %v87
  %89 = vmatmul.f32.gmra.mxu0 %v46
  %v90 = vpop.f32.mrf.mxu0
  %v91 = vadd.f32 %v39, %v90
  %92 = vmatmul.f32.gmra.mxu0 %v49
  %v93 = vpop.f32.mrf.mxu0
  %v94 = vadd.f32 %v39, %v93
  %95 = vmatmul.f32.gmra.mxu0 %v52
  %v96 = vpop.f32.mrf.mxu0
  %v97 = vadd.f32 %v39, %v96
  %98 = vmatmul.f32.gmra.mxu0 %v55
  %v99 = vpop.f32.mrf.mxu0
  %v100 = vadd.f32 %v39, %v99
  %101 = vmatmul.f32.gmra.mxu0 %v58
  %v102 = vpop.f32.mrf.mxu0
  %v103 = vadd.f32 %v39, %v102
  %104 = vmatmul.f32.gmra.mxu0 %v61
  %v105 = vpop.f32.mrf.mxu0
  %v106 = vadd.f32 %v39, %v105
  %107 = vmatmul.f32.gmra.mxu0 %v64
  %v108 = vpop.f32.mrf.mxu0
  %v109 = vadd.f32 %v39, %v108
  %110 = vdwg.mxu0
  %v111 = vmax.f32 %v88, 0.0
  %v112 = vmax.f32 %v91, 0.0
  %v113 = vmax.f32 %v94, 0.0
  %v114 = vmax.f32 %v97, 0.0
  %v115 = vmax.f32 %v100, 0.0
  %v116 = vmax.f32 %v103, 0.0
  %v117 = vmax.f32 %v106, 0.0
  %v118 = vmax.f32 %v109, 0.0
  %v119 = vld [vmem:[%s3] sm:$0xff]
  %v120 = vld [vmem:[%s3 + $0x8] sm:$0xff]
  %v121 = vld [vmem:[%s3 + $0x10] sm:$0xff]
  %v122 = vld [vmem:[%s3 + $0x18] sm:$0xff]
  %v123 = vld [vmem:[%s3 + $0x20] sm:$0xff]
  %v124 = vld [vmem:[%s3 + $0x28] sm:$0xff]
  %v125 = vld [vmem:[%s3 + $0x30] sm:$0xff]
  %v126 = vld [vmem:[%s3 + $0x38] sm:$0xff]
  %v127 = vld [vmem:[%s3 + $0x40] sm:$0xff]
  %v128 = vld [vmem:[%s3 + $0x48] sm:$0xff]
  %v129 = vld [vmem:[%s3 + $0x50] sm:$0xff]
  %v130 = vld [vmem:[%s3 + $0x58] sm:$0xff]
  %v131 = vld [vmem:[%s3 + $0x60] sm:$0xf]
  %v132 = vld [vmem:[%s4] sm:$0x1]
  %v134 = vperm.slane %v132, 0
  %vm136 = vcmask 818176
  %v138 = vsel %vm136, %v111, 0
  %v141 = vsel %vm136, %v112, 0
  %v144 = vsel %vm136, %v113, 0
  %v147 = vsel %vm136, %v114, 0
  %v150 = vsel %vm136, %v115, 0
  %v153 = vsel %vm136, %v116, 0
  %v156 = vsel %vm136, %v117, 0
  %v159 = vsel %vm136, %v118, 0
  %v162 = vsel %vm66, %v131, 0
  %164 = vmatpush.msra.mxu0 0.0
  %165 = vmatpush.msra.mxu0 0.0
  %166 = vmatpush.msra.mxu0 0.0
  %167 = vmatpush.msra.mxu0 %v162
  %168 = vmatpush.msra.mxu0 %v130
  %169 = vmatpush.msra.mxu0 %v129
  %170 = vmatpush.msra.mxu0 %v128
  %171 = vmatpush.msra.mxu0 %v127
  %172 = vmatpush.msra.mxu0 %v126
  %173 = vmatpush.msra.mxu0 %v125
  %174 = vmatpush.msra.mxu0 %v124
  %175 = vmatpush.msra.mxu0 %v123
  %176 = vmatpush.msra.mxu0 %v122
  %177 = vmatpush.msra.mxu0 %v121
  %178 = vmatpush.msra.mxu0 %v120
  %179 = vmatpush.msra.mxu0 %v119
  %180 = vmatmul.f32.gmra.mxu0 %v138
  %v181 = vpop.f32.mrf.mxu0
  %v182 = vadd.f32 %v134, %v181
  %183 = vmatmul.f32.gmra.mxu0 %v141
  %v184 = vpop.f32.mrf.mxu0
  %v185 = vadd.f32 %v134, %v184
  %186 = vmatmul.f32.gmra.mxu0 %v144
  %v187 = vpop.f32.mrf.mxu0
  %v188 = vadd.f32 %v134, %v187
  %189 = vmatmul.f32.gmra.mxu0 %v147
  %v190 = vpop.f32.mrf.mxu0
  %v191 = vadd.f32 %v134, %v190
  %192 = vmatmul.f32.gmra.mxu0 %v150
  %v193 = vpop.f32.mrf.mxu0
  %v194 = vadd.f32 %v134, %v193
  %195 = vmatmul.f32.gmra.mxu0 %v153
  %v196 = vpop.f32.mrf.mxu0
  %v197 = vadd.f32 %v134, %v196
  %198 = vmatmul.f32.gmra.mxu0 %v156
  %v199 = vpop.f32.mrf.mxu0
  %v200 = vadd.f32 %v134, %v199
  %201 = vmatmul.f32.gmra.mxu0 %v159
  %v202 = vpop.f32.mrf.mxu0
  %v203 = vadd.f32 %v134, %v202
  %204 = vdwg.mxu0
  %v205 = vmax.f32 %v182, 0.0
  %v206 = vmax.f32 %v185, 0.0
  %v207 = vmax.f32 %v188, 0.0
  %v208 = vmax.f32 %v191, 0.0
  %v209 = vmax.f32 %v194, 0.0
  %v210 = vmax.f32 %v197, 0.0
  %v211 = vmax.f32 %v200, 0.0
  %v212 = vmax.f32 %v203, 0.0
  %v213 = vld [vmem:[%s5] sm:$0xff]
  %v214 = vld [vmem:[%s5 + $0x8] sm:$0xff]
  %v215 = vld [vmem:[%s5 + $0x10] sm:$0xff]
  %v216 = vld [vmem:[%s5 + $0x18] sm:$0xff]
  %v217 = vld [vmem:[%s5 + $0x20] sm:$0xff]
  %v218 = vld [vmem:[%s5 + $0x28] sm:$0xff]
  %v219 = vld [vmem:[%s5 + $0x30] sm:$0xff]
  %v220 = vld [vmem:[%s5 + $0x38] sm:$0xff]
  %v221 = vld [vmem:[%s5 + $0x40] sm:$0xff]
  %v222 = vld [vmem:[%s5 + $0x48] sm:$0xff]
  %v223 = vld [vmem:[%s5 + $0x50] sm:$0xff]
  %v224 = vld [vmem:[%s5 + $0x58] sm:$0xff]
  %v225 = vld [vmem:[%s5 + $0x60] sm:$0xf]
  %v226 = vld [vmem:[%s6] sm:$0x1]
  %v228 = vperm.slane %v226, 0
  %v231 = vsel %vm136, %v205, 0
  %v234 = vsel %vm136, %v206, 0
  %v237 = vsel %vm136, %v207, 0
  %v240 = vsel %vm136, %v208, 0
  %v243 = vsel %vm136, %v209, 0
  %v246 = vsel %vm136, %v210, 0
  %v249 = vsel %vm136, %v211, 0
  %v252 = vsel %vm136, %v212, 0
  %v255 = vsel %vm66, %v225, 0
  %257 = vmatpush.msra.mxu0 0.0
  %258 = vmatpush.msra.mxu0 0.0
  %259 = vmatpush.msra.mxu0 0.0
  %260 = vmatpush.msra.mxu0 %v255
  %261 = vmatpush.msra.mxu0 %v224
  %262 = vmatpush.msra.mxu0 %v223
  %263 = vmatpush.msra.mxu0 %v222
  %264 = vmatpush.msra.mxu0 %v221
  %265 = vmatpush.msra.mxu0 %v220
  %266 = vmatpush.msra.mxu0 %v219
  %267 = vmatpush.msra.mxu0 %v218
  %268 = vmatpush.msra.mxu0 %v217
  %269 = vmatpush.msra.mxu0 %v216
  %270 = vmatpush.msra.mxu0 %v215
  %271 = vmatpush.msra.mxu0 %v214
  %272 = vmatpush.msra.mxu0 %v213
  %273 = vmatmul.f32.gmra.mxu0 %v231
  %v274 = vpop.f32.mrf.mxu0
  %v275 = vadd.f32 %v228, %v274
  %276 = vmatmul.f32.gmra.mxu0 %v234
  %v277 = vpop.f32.mrf.mxu0
  %v278 = vadd.f32 %v228, %v277
  %279 = vmatmul.f32.gmra.mxu0 %v237
  %v280 = vpop.f32.mrf.mxu0
  %v281 = vadd.f32 %v228, %v280
  %282 = vmatmul.f32.gmra.mxu0 %v240
  %v283 = vpop.f32.mrf.mxu0
  %v284 = vadd.f32 %v228, %v283
  %285 = vmatmul.f32.gmra.mxu0 %v243
  %v286 = vpop.f32.mrf.mxu0
  %v287 = vadd.f32 %v228, %v286
  %288 = vmatmul.f32.gmra.mxu0 %v246
  %v289 = vpop.f32.mrf.mxu0
  %v290 = vadd.f32 %v228, %v289
  %291 = vmatmul.f32.gmra.mxu0 %v249
  %v292 = vpop.f32.mrf.mxu0
  %v293 = vadd.f32 %v228, %v292
  %294 = vmatmul.f32.gmra.mxu0 %v252
  %v295 = vpop.f32.mrf.mxu0
  %v296 = vadd.f32 %v228, %v295
  %297 = vdwg.mxu0
  %vm298 = vcmask 23552
  %299 = vst.msk [vmem:[%s7] sm:$0xff] %vm298, %v275
  %300 = vst.msk [vmem:[%s7 + $0x8] sm:$0xff] %vm298, %v278
  %301 = vst.msk [vmem:[%s7 + $0x10] sm:$0xff] %vm298, %v281
  %302 = vst.msk [vmem:[%s7 + $0x18] sm:$0xff] %vm298, %v284
  %303 = vst.msk [vmem:[%s7 + $0x20] sm:$0xff] %vm298, %v287
  %304 = vst.msk [vmem:[%s7 + $0x28] sm:$0xff] %vm298, %v290
  %305 = vst.msk [vmem:[%s7 + $0x30] sm:$0xff] %vm298, %v293
  %306 = vst.msk [vmem:[%s7 + $0x38] sm:$0xff] %vm298, %v296
  // Predicated region
  $region30: #{tpu_custom_call.1} parent=0 // pred_check
    _
  $region31: #{tpu_custom_call.1} parent=0 // pred_check_branch
    %308 = sbr.rel (0) target = $region33
  $region32: #{tpu_custom_call.1} parent=0 // pred_region
    _
  $region33: #{tpu_custom_call.1} parent=0 // pred_fallthru
    _
  // Predicated region
  $region34: #{tpu_custom_call.1} parent=0 // pred_check
    _
  $region35: #{tpu_custom_call.1} parent=0 // pred_check_branch
    %310 = sbr.rel (0) target = $region37
  $region36: #{tpu_custom_call.1} parent=0 // pred_region
    _
  $region37: #{tpu_custom_call.1} parent=0 // pred_fallthru
    _

</llo_original>
